<compile_context>
chip_gen: v6e
topology: v6e:2x2x1
jax: 0.10.0
libtpu: 0.0.40
codegen_flags: <defaults>
</compile_context>

<pallas_src>
import numpy as np
import jax
import jax.numpy as jnp
from jax.experimental import pallas as pl
from jax.experimental.pallas import tpu as pltpu


# ---------------------------------------------------------------------------
# helpers
# ---------------------------------------------------------------------------
def _round_up(x, m):
    return ((x + m - 1) // m) * m


def _pad2d(x, rows, cols):
    r, c = x.shape
    if r == rows and c == cols:
        return x                      # already tile-padded -> no extra HBM pass
    return jnp.pad(x, ((0, rows - r), (0, cols - c)))


def _pick_row_tile(m, requested, *, want_two_blocks=False):
    """Largest 128-multiple tile <= requested that covers m; optionally shrink so the
    padded extent has >= 2 blocks (keeps both v7x TensorCores busy on the row axis)."""
    t = min(_round_up(requested, 128), _round_up(m, 128))
    if want_two_blocks:
        while t > 128 and _round_up(m, t) // t < 2:
            t = _round_up(t // 2, 128)
    return t


# ---------------------------------------------------------------------------
# Pallas kernel: tiled MXU matmul + bias epilogue, f32 accumulation
# ---------------------------------------------------------------------------
def matmul_bias(a, b, bias, *, tm, tn, tk, out_dtype=jnp.float32,
                mxu_dtype=jnp.bfloat16, out_padded=False):
    """out = a @ b + bias[None, :]  — tiled MXU matmul.

    * Inputs may be pre-padded to tile multiples (then padding here is a no-op).
    * Operand blocks are cast to `mxu_dtype` INSIDE the kernel, so f32 operands are
      streamed from HBM exactly once (no separate cast pass).
    * grid = (M/tm, N/tn, K/tk) with an f32 VMEM accumulator, pl.when init/finalize
      on the reduction axis, dimension_semantics = (parallel, parallel, arbitrary).
    * vmem_limit_bytes is sized from the actual tile footprint (v5e's default scoped
      VMEM is only 16 MiB), capped at 64 MiB (v7x physical VMEM).
    """
    M, K = a.shape
    Kb, N = b.shape
    assert K == Kb and bias.shape == (N,)

    tm = min(tm, _round_up(M, 128))
    tn = min(tn, _round_up(N, 128))
    tk = min(tk, _round_up(K, 128))
    Mp, Kp, Np = _round_up(M, tm), _round_up(K, tk), _round_up(N, tn)

    ap = _pad2d(a, Mp, Kp)
    bp = _pad2d(b, Kp, Np)
    biasp = _pad2d(bias.reshape(1, N).astype(jnp.float32), 1, Np)

    def kernel(a_ref, b_ref, bias_ref, o_ref, acc_ref):
        @pl.when(pl.program_id(2) == 0)
        def _():
            acc_ref[...] = jnp.zeros_like(acc_ref)

        acc_ref[...] += jnp.dot(a_ref[...].astype(mxu_dtype),
                                b_ref[...].astype(mxu_dtype),
                                preferred_element_type=jnp.float32)

        @pl.when(pl.program_id(2) == pl.num_programs(2) - 1)
        def _():
            o_ref[...] = (acc_ref[...] + bias_ref[...]).astype(o_ref.dtype)

    # Double-buffered inputs/output + f32 accumulator, plus compiler headroom.
    per_step_bytes = (tm * tk * ap.dtype.itemsize
                      + tk * tn * bp.dtype.itemsize
                      + tm * tn * jnp.dtype(out_dtype).itemsize
                      + tn * 4)
    vmem_limit = int(min(64 * 2**20,
                         max(32 * 2**20,
                             2 * per_step_bytes + tm * tn * 4 + (8 << 20))))

    out = pl.pallas_call(
        kernel,
        out_shape=jax.ShapeDtypeStruct((Mp, Np), out_dtype),
        grid_spec=pltpu.PrefetchScalarGridSpec(
            num_scalar_prefetch=0,
            grid=(Mp // tm, Np // tn, Kp // tk),
            in_specs=[pl.BlockSpec((tm, tk), lambda i, j, k: (i, k)),
                      pl.BlockSpec((tk, tn), lambda i, j, k: (k, j)),
                      pl.BlockSpec((1, tn), lambda i, j, k: (0, j))],
            out_specs=pl.BlockSpec((tm, tn), lambda i, j, k: (i, j)),
            scratch_shapes=[pltpu.VMEM((tm, tn), jnp.float32)],
        ),
        compiler_params=pltpu.CompilerParams(
            dimension_semantics=("parallel", "parallel", "arbitrary"),
            vmem_limit_bytes=vmem_limit),
    )(ap, bp, biasp)
    if out_padded:
        return out
    return out[:M, :N]


# ---------------------------------------------------------------------------
# graph_prompt_structure equivalent
# ---------------------------------------------------------------------------
class GraphPromptStructure:
    def __init__(self, feature, adj_indices, adj_values, prototype, num_nodes,
                 graphnum, label_num, graph_len, key):
        self.feature = feature                       # (N, F)
        self.adj_indices = np.asarray(adj_indices)   # (2, E)  COO indices
        self.adj_values = adj_values                 # (E,)    COO values
        self.prototype = prototype                   # (L, F)
        self.num_nodes = num_nodes
        self.graphnum = graphnum
        self.label_num = label_num
        self.graph_len = list(graph_len)

        # nn.Parameter(torch.Tensor(graphnum, label_num)) -> deterministic stand-in
        # init (the reference leaves it uninitialized until reset_parameters).
        self.weight = jax.random.normal(key, (graphnum, label_num), dtype=jnp.float32)

        # new_indices construction mirrors reset_parameters(): prompt edges connect
        # every node of graph i to label ids 0..L-1 (reproduced exactly as in the
        # reference code).
        repeated_list, label_list = [], []
        start = 0
        for length in self.graph_len:
            end = start + length
            ext = list(range(start, end))
            repeated_list.extend(ext * label_num)
            for j in range(label_num):
                label_list.extend([j] * length)
            start = end
        idx0 = np.concatenate([self.adj_indices[0],
                               np.asarray(repeated_list, np.int32),
                               np.asarray(label_list, np.int32)])
        idx1 = np.concatenate([self.adj_indices[1],
                               np.asarray(label_list, np.int32),
                               np.asarray(repeated_list, np.int32)])
        self.new_indices = jnp.asarray(np.stack([idx0, idx1]), dtype=jnp.int32)

        # Precomputed repeats for the vectorized repeat_interleave of softmax(weight).
        gl = np.asarray(self.graph_len, np.int64)
        self._repeats = jnp.asarray(np.repeat(gl, label_num), dtype=jnp.int32)
        self._total_prompt_edges = int(gl.sum()) * label_num

    def forward(self, mask_params, context_params, X, config):
        L = self.label_num
        N = self.num_nodes
        size = N + L
        F_dim = X.shape[1]

        Wm, bm = mask_params
        Wc, bc = context_params
        Hm, Hc = Wm.shape[1], Wc.shape[1]
        Hm_p, Hc_p = _round_up(Hm, 128), _round_up(Hc, 128)

        # --- per-call-site tiling (performance review) --------------------------
        # call 1 (X @ [Wm|Wc]): single K and N blocks -> big row tiles so each grid
        # step streams >= 1 MiB of X instead of being per-step-overhead bound.
        tk1 = min(512, _round_up(F_dim, 128))
        n_cat = Hm_p + Hc_p
        tn1 = n_cat if n_cat <= 512 else 128
        tm1 = _pick_row_tile(size, 2048)
        # call 2 (A @ XWc): thin N (Hc) -> large tm/tk so the A-streaming matmul is
        # HBM-roofline bound; tk2 == tm1 so call 1's padded rows feed call 2 as-is.
        tm2 = _pick_row_tile(size, 512, want_two_blocks=True)
        tk2 = tm1
        tn2 = Hc_p

        Mp1 = _round_up(size, tm1)            # == Kp2 by construction (tk2 == tm1)
        Kp1 = _round_up(F_dim, tk1)
        Mp2 = _round_up(size, tm2)
        Kp2 = Mp1

        # --- expanded prompt weights: softmax(weight) repeat_interleaved per graph ---
        # (graphnum, label_num) is microscopic -> plain jnp softmax (exact), no
        # Pallas launch / masked 3-lane stores.
        sw = jax.nn.softmax(self.weight.astype(jnp.float32), axis=-1)      # (G, L)
        expanded = jnp.repeat(sw.reshape(-1), self._repeats,
                              total_repeat_length=self._total_prompt_edges)
        new_values = jnp.concatenate([self.adj_values, expanded, expanded], axis=0)

        # --- sparse_coo_tensor(...).coalesce().to_dense() == scatter-add ---------
        # Scatter straight into the tile-padded buffer the GCN matmul reads, so no
        # extra pad/cast HBM passes are paid over the (N+L)^2 matrix (bf16 cast
        # happens per-block inside the kernel).
        # TODO(synk): COO coalesce is a data-dependent scatter (no clean TPU Pallas
        # scatter); at large N the dense path should be replaced by a structured
        # SpMM (per-graph segment sums + a (G,L)@(L,Hc) prompt term) or a
        # scalar-prefetch kernel that skips all-zero A tiles.
        adj_pad = jnp.zeros((Mp2, Kp2), jnp.float32).at[
            self.new_indices[0], self.new_indices[1]
        ].add(new_values)

        # --- pre_train(...) -------------------------------------------------------
        # config['update_pretrain'] only flips train()/eval(); the linear / GCN
        # stand-ins have no dropout / batchnorm, so it is a no-op here.
        _ = config["update_pretrain"]

        # Fused first matmul: Y = X @ [Wm | Wc] + [bm | 0], each head padded to its
        # own 128-lane column block so the context half is already lane-dense, zero
        # in the padding, and directly consumable by the second matmul.
        # X[:N] == feature (reset_parameters / demo construction), so the mask head
        # shares the same activation rows and `feature` is read from HBM only once.
        X_pad = _pad2d(X.astype(jnp.float32), Mp1, Kp1)
        W_cat = jnp.zeros((Kp1, n_cat), jnp.float32)
        W_cat = W_cat.at[:F_dim, :Hm].set(Wm)
        W_cat = W_cat.at[:F_dim, Hm_p:Hm_p + Hc].set(Wc)
        b_cat = jnp.zeros((n_cat,), jnp.float32).at[:Hm].set(bm)

        Y_pad = matmul_bias(X_pad, W_cat, b_cat, tm=tm1, tn=tn1, tk=tk1,
                            out_padded=True)                  # (Mp1, Hm_p+Hc_p) f32
        pred_mask = Y_pad[:N, :Hm]                             # feature @ Wm + bm
        XWc_pad = Y_pad[:, Hm_p:Hm_p + Hc_p]                   # (Kp2, Hc_p), zero pad

        # pre_train_context stand-in: one GCN layer  A @ (X @ Wc) + bc.
        bc_pad = jnp.zeros((Hc_p,), jnp.float32).at[:Hc].set(bc)
        ctx_pad = matmul_bias(adj_pad, XWc_pad, bc_pad, tm=tm2, tn=tn2, tk=tk2,
                              out_padded=True)                 # (Mp2, Hc_p)
        pred_context = ctx_pad[:size, :Hc]

        pro_pred_mask = pred_mask[-L:, :]
        pro_pred_context = pred_context[-L:, :]
        return pred_mask, pred_context, pro_pred_mask, pro_pred_context, self.weight


# ---------------------------------------------------------------------------
if __name__ == "__main__":
    key = jax.random.PRNGKey(0)
    k1, k2, k3, k4, k5, k6, k7 = jax.random.split(key, 7)

    num_nodes = 16
    feat_dim = 8
    hidden = 32
    graph_len = [4, 4, 4, 4]
    graphnum = len(graph_len)
    label_num = 3

    feature = jax.random.normal(k1, (num_nodes, feat_dim), jnp.float32)
    prototype = jax.random.normal(k2, (label_num, feat_dim), jnp.float32)

    # deterministic sparse adjacency: a ring inside each small graph
    rows, cols = [], []
    start = 0
    for length in graph_len:
        for p in range(length):
            a = start + p
            b = start + (p + 1) % length
            rows += [a, b]
            cols += [b, a]
        start += length
    adj_indices = np.stack([np.array(rows), np.array(cols)]).astype(np.int32)
    adj_values = jnp.ones((adj_indices.shape[1],), jnp.float32)

    module = GraphPromptStructure(feature, adj_indices, adj_values, prototype,
                                  num_nodes, graphnum, label_num, graph_len, k3)

    # stand-in pre-train models (architectures not defined in the reference file):
    #   pre_train_mask    -> Linear(F -> H)
    #   pre_train_context -> one GCN layer (F -> H) using the prompt-augmented adjacency
    Wm = 0.1 * jax.random.normal(k4, (feat_dim, hidden), jnp.float32)
    bm = 0.1 * jax.random.normal(k5, (hidden,), jnp.float32)
    Wc = 0.1 * jax.random.normal(k6, (feat_dim, hidden), jnp.float32)
    bc = 0.1 * jax.random.normal(k7, (hidden,), jnp.float32)

    # X = [feature; prototype]  (as built by reset_parameters)
    X = jnp.concatenate([feature, prototype], axis=0)
    config = {"update_pretrain": False}

    outs = module.forward((Wm, bm), (Wc, bc), X, config)
    outs = jax.block_until_ready(outs)
    pred_mask, pred_context, pro_pred_mask, pro_pred_context, weight = outs

    assert pred_mask.shape == (num_nodes, hidden)
    assert pred_context.shape == (num_nodes + label_num, hidden)
    assert pro_pred_mask.shape == (label_num, hidden)
    assert pro_pred_context.shape == (label_num, hidden)
    assert weight.shape == (graphnum, label_num)
    print("KERNEL_OK")
</pallas_src>

<mosaic_0001>
module attributes {stable_mosaic.version = 11 : i64} {
  func.func @kernel(%arg0: i32, %arg1: i32, %arg2: i32, %arg3: memref<128x128xf32, #tpu.memory_space<vmem>>, %arg4: memref<128x256xf32, #tpu.memory_space<vmem>>, %arg5: memref<1x256xf32, #tpu.memory_space<vmem>>, %arg6: memref<128x256xf32, #tpu.memory_space<vmem>>, %arg7: memref<128x256xf32, #tpu.memory_space<vmem>>) attributes {dimension_semantics = [#tpu.dimension_semantics<parallel>, #tpu.dimension_semantics<parallel>, #tpu.dimension_semantics<arbitrary>], iteration_bounds = array<i64: 1, 1, 1>, scalar_prefetch = 0 : i64, scratch_operands = 1 : i64, tpu.core_type = #tpu.core_type<tc>, window_params = [{transform_indices = @transform_0, window_bounds = array<i64: 128, 128>}, {transform_indices = @transform_1, window_bounds = array<i64: 128, 256>}, {transform_indices = @transform_2, window_bounds = array<i64: 1, 256>}, {transform_indices = @transform_3, window_bounds = array<i64: 128, 256>}]} {
    %c0_i32 = arith.constant 0 : i32
    %0 = arith.cmpi eq, %arg2, %c0_i32 : i32
    %1 = arith.extui %0 : i1 to i32
    %c0_i32_0 = arith.constant 0 : i32
    %2 = arith.cmpi ne, %1, %c0_i32_0 : i32
    scf.if %2 {
      %cst_10 = arith.constant 0.000000e+00 : f32
      %14 = vector.broadcast %cst_10 : f32 to vector<128x256xf32>
      %c0_11 = arith.constant 0 : index
      %c0_12 = arith.constant 0 : index
      %15 = vector.load %arg7[%c0_11, %c0_12] : memref<128x256xf32, #tpu.memory_space<vmem>>, vector<128x256xf32>
      tpu.vector_store %arg7[%c0_11, %c0_12], %14 {strides = array<i32>} : memref<128x256xf32, #tpu.memory_space<vmem>>, vector<128x256xf32>,
    } else {
    }
    %c0 = arith.constant 0 : index
    %c0_1 = arith.constant 0 : index
    %3 = vector.load %arg7[%c0, %c0_1] : memref<128x256xf32, #tpu.memory_space<vmem>>, vector<128x256xf32>
    %c0_2 = arith.constant 0 : index
    %c0_3 = arith.constant 0 : index
    %4 = vector.load %arg3[%c0_2, %c0_3] : memref<128x128xf32, #tpu.memory_space<vmem>>, vector<128x128xf32>
    %5 = arith.truncf %4 : vector<128x128xf32> to vector<128x128xbf16>
    %c0_4 = arith.constant 0 : index
    %c0_5 = arith.constant 0 : index
    %6 = vector.load %arg4[%c0_4, %c0_5] : memref<128x256xf32, #tpu.memory_space<vmem>>, vector<128x256xf32>
    %7 = arith.truncf %6 : vector<128x256xf32> to vector<128x256xbf16>
    %cst = arith.constant dense<0.000000e+00> : vector<128x256xf32>
    %8 = tpu.matmul %5, %7, %cst {dimension_numbers = #tpu.dot_dimension_numbers<[1], [0], [0], [1], [0, 0, 1, 1], [], []>} : vector<128x128xbf16>, vector<128x256xbf16>, vector<128x256xf32> -> vector<128x256xf32>
    %9 = arith.addf %3, %8 : vector<128x256xf32>
    %c0_6 = arith.constant 0 : index
    %c0_7 = arith.constant 0 : index
    %10 = vector.load %arg7[%c0_6, %c0_7] : memref<128x256xf32, #tpu.memory_space<vmem>>, vector<128x256xf32>
    tpu.vector_store %arg7[%c0_6, %c0_7], %9 {strides = array<i32>} : memref<128x256xf32, #tpu.memory_space<vmem>>, vector<128x256xf32>,
    %c0_i32_8 = arith.constant 0 : i32
    %11 = arith.cmpi eq, %arg2, %c0_i32_8 : i32
    %12 = arith.extui %11 : i1 to i32
    %c0_i32_9 = arith.constant 0 : i32
    %13 = arith.cmpi ne, %12, %c0_i32_9 : i32
    scf.if %13 {
      %c0_10 = arith.constant 0 : index
      %c0_11 = arith.constant 0 : index
      %14 = vector.load %arg7[%c0_10, %c0_11] : memref<128x256xf32, #tpu.memory_space<vmem>>, vector<128x256xf32>
      %c0_12 = arith.constant 0 : index
      %c0_13 = arith.constant 0 : index
      %15 = vector.load %arg5[%c0_12, %c0_13] : memref<1x256xf32, #tpu.memory_space<vmem>>, vector<1x256xf32>
      %16 = vector.broadcast %15 : vector<1x256xf32> to vector<128x256xf32>
      %17 = arith.addf %14, %16 : vector<128x256xf32>
      %c0_14 = arith.constant 0 : index
      %c0_15 = arith.constant 0 : index
      %18 = vector.load %arg6[%c0_14, %c0_15] : memref<128x256xf32, #tpu.memory_space<vmem>>, vector<128x256xf32>
      tpu.vector_store %arg6[%c0_14, %c0_15], %17 {strides = array<i32>} : memref<128x256xf32, #tpu.memory_space<vmem>>, vector<128x256xf32>,
    } else {
    }
    return
  }
  func.func @transform_0(%arg0: i32, %arg1: i32, %arg2: i32) -> (i32, i32) {
    %c0_i32 = arith.constant 0 : i32
    return %arg0, %arg2 : i32, i32
  }
  func.func @transform_1(%arg0: i32, %arg1: i32, %arg2: i32) -> (i32, i32) {
    %c0_i32 = arith.constant 0 : i32
    return %arg2, %arg1 : i32, i32
  }
  func.func @transform_2(%arg0: i32, %arg1: i32, %arg2: i32) -> (i32, i32) {
    %c0_i32 = arith.constant 0 : i32
    %c0_i32_0 = arith.constant 0 : i32
    return %c0_i32, %arg1 : i32, i32
  }
  func.func @transform_3(%arg0: i32, %arg1: i32, %arg2: i32) -> (i32, i32) {
    %c0_i32 = arith.constant 0 : i32
    return %arg0, %arg1 : i32, i32
  }
}

</mosaic_0001>

<llo_original>
// kernel: tpu_custom_call.1
$region0: #{tpu_custom_call.1}
  #allocation0 [shape = 'u32[]', space=smem, size = 0x4, offset = 0x4, fixed_abs, tag = 'smem constant byte address 0x4 - core index']
  #allocation1 [shape = 'u32[144,128]{1,0:T(1,128)}', space=vmem, size = 0x12000, scoped, tag = 'internal scratch']
  #allocation2 [shape = 'f32[128,256]{1,0:T(8,128)}', space=vmem, size = 0x20000, scoped, tag = 'scratch operand']
  %s0 = inlined_call_operand.hbm [shape: f32[128,128], index: 0, kind: input, shape index: {}]
  %s1 = inlined_call_operand.hbm [shape: f32[128,256], index: 1, kind: input, shape index: {}]
  %s2 = inlined_call_operand.vmem [shape: f32[1,256], index: 2, kind: input, shape index: {}]
  %s3 = inlined_call_operand.hbm [shape: f32[128,256], index: 3, kind: output, shape index: {}]
  %s4 = sld [smem:[#allocation0]]
  $region38: #{tpu_custom_call.1} parent=0
    _
  %s6 = ssub.s32 1, %s4
  %s7 = scalar_select 0, %s6, %s4
  $region1: #{tpu_custom_call.1} parent=0
    #allocation3 [shape = 'u8[65536]{0}', space=vmem, size = 0x10000, scoped, tag = 'input window, operand 0, single buffered']
    #allocation4 [shape = 's32[1]{0}', space=sflag, size = 0x4, scoped, tag = 'scoped memory for tpu_custom_call.1']
    #allocation5 [shape = 's32[1]{0}', space=sflag, size = 0x4, scoped, tag = 'scoped memory for tpu_custom_call.1']
    #allocation6 [shape = 'u8[131072]{0}', space=vmem, size = 0x20000, scoped, tag = 'input window, operand 1, single buffered']
    #allocation7 [shape = 's32[1]{0}', space=sflag, size = 0x4, scoped, tag = 'scoped memory for tpu_custom_call.1']
    #allocation8 [shape = 'u8[131072]{0}', space=vmem, size = 0x20000, scoped, tag = 'output window, operand 0, single buffered']
    %8 = vsyncpa [#allocation4], 0
    %9 = vsyncpa [#allocation7], 0
    %10 = vsyncpa [#allocation5], 0
    // Predicated region
    $region2: #{tpu_custom_call.1} parent=1 // pred_check
      _
    $region3: #{tpu_custom_call.1} parent=1 // pred_check_branch
      %12 = sbr.rel (0) target = $region5
    $region4: #{tpu_custom_call.1} parent=1 // pred_region
      %s14 = ssub.s32 2048, 2048
      %15 = vsyncadd [#allocation4], %s14
      %s16 = sshll.u32 [#allocation3], 4
      %s17 = int_to_ptr.vmem [resolvable:$true] %s16
      %22 = dma.hbm_to_vmem [thread:$0]  %s0, 2048, %s17, [#allocation4], 128, 128, 8
    $region5: #{tpu_custom_call.1} parent=1 // pred_fallthru
      _
    // Predicated region
    $region6: #{tpu_custom_call.1} parent=1 // pred_check
      _
    $region7: #{tpu_custom_call.1} parent=1 // pred_check_branch
      %24 = sbr.rel (0) target = $region9
    $region8: #{tpu_custom_call.1} parent=1 // pred_region
      %s26 = ssub.s32 4096, 4096
      %27 = vsyncadd [#allocation7], %s26
      %s28 = sshll.u32 [#allocation6], 4
      %s29 = int_to_ptr.vmem [resolvable:$true] %s28
      %34 = dma.hbm_to_vmem [thread:$0]  %s1, 4096, %s29, [#allocation7], 256, 256, 16
    $region9: #{tpu_custom_call.1} parent=1 // pred_fallthru
      _
    // Predicated region
    $region10: #{tpu_custom_call.1} parent=1 // pred_check
      _
    $region11: #{tpu_custom_call.1} parent=1 // pred_check_branch
      %36 = sbr.rel (0) target = $region13
    $region12: #{tpu_custom_call.1} parent=1 // pred_region
      _
    $region13: #{tpu_custom_call.1} parent=1 // pred_fallthru
      _
    // Predicated region
    $region14: #{tpu_custom_call.1} parent=1 // pred_check
      _
    $region15: #{tpu_custom_call.1} parent=1 // pred_check_branch
      %38 = sbr.rel (0) target = $region17
    $region16: #{tpu_custom_call.1} parent=1 // pred_region
      %39 = dma.done [#allocation4], 2048
    $region17: #{tpu_custom_call.1} parent=1 // pred_fallthru
      _
    // Predicated region
    $region18: #{tpu_custom_call.1} parent=1 // pred_check
      _
    $region19: #{tpu_custom_call.1} parent=1 // pred_check_branch
      %41 = sbr.rel (0) target = $region21
    $region20: #{tpu_custom_call.1} parent=1 // pred_region
      %42 = dma.done [#allocation7], 4096
    $region21: #{tpu_custom_call.1} parent=1 // pred_fallthru
      _
    %p44 = scmp.eq.s32.totalorder 0, 0
    // Predicated region
    $region22: #{tpu_custom_call.1} parent=1 // pred_check
      %p45 = pneg %p44
    $region23: #{tpu_custom_call.1} parent=1 // pred_check_branch
      %47 = sbr.rel (%p45) target = $region25
    $region24: #{tpu_custom_call.1} parent=1 // pred_region
      %48 = vst [vmem:[#allocation2] sm:$0xff] 0.0
      %49 = vst [vmem:[#allocation2 + $0x8] sm:$0xff] 0.0
      %50 = vst [vmem:[#allocation2 + $0x10] sm:$0xff] 0.0
      %51 = vst [vmem:[#allocation2 + $0x18] sm:$0xff] 0.0
      %52 = vst [vmem:[#allocation2 + $0x20] sm:$0xff] 0.0
      %53 = vst [vmem:[#allocation2 + $0x28] sm:$0xff] 0.0
      %54 = vst [vmem:[#allocation2 + $0x30] sm:$0xff] 0.0
      %55 = vst [vmem:[#allocation2 + $0x38] sm:$0xff] 0.0
      %56 = vst [vmem:[#allocation2 + $0x40] sm:$0xff] 0.0
      %57 = vst [vmem:[#allocation2 + $0x48] sm:$0xff] 0.0
      %58 = vst [vmem:[#allocation2 + $0x50] sm:$0xff] 0.0
      %59 = vst [vmem:[#allocation2 + $0x58] sm:$0xff] 0.0
      %60 = vst [vmem:[#allocation2 + $0x60] sm:$0xff] 0.0
      %61 = vst [vmem:[#allocation2 + $0x68] sm:$0xff] 0.0
      %62 = vst [vmem:[#allocation2 + $0x70] sm:$0xff] 0.0
      %63 = vst [vmem:[#allocation2 + $0x78] sm:$0xff] 0.0
      %64 = vst [vmem:[#allocation2 + $0x80] sm:$0xff] 0.0
      %65 = vst [vmem:[#allocation2 + $0x88] sm:$0xff] 0.0
      %66 = vst [vmem:[#allocation2 + $0x90] sm:$0xff] 0.0
      %67 = vst [vmem:[#allocation2 + $0x98] sm:$0xff] 0.0
      %68 = vst [vmem:[#allocation2 + $0xa0] sm:$0xff] 0.0
      %69 = vst [vmem:[#allocation2 + $0xa8] sm:$0xff] 0.0
      %70 = vst [vmem:[#allocation2 + $0xb0] sm:$0xff] 0.0
      %71 = vst [vmem:[#allocation2 + $0xb8] sm:$0xff] 0.0
      %72 = vst [vmem:[#allocation2 + $0xc0] sm:$0xff] 0.0
      %73 = vst [vmem:[#allocation2 + $0xc8] sm:$0xff] 0.0
      %74 = vst [vmem:[#allocation2 + $0xd0] sm:$0xff] 0.0
      %75 = vst [vmem:[#allocation2 + $0xd8] sm:$0xff] 0.0
      %76 = vst [vmem:[#allocation2 + $0xe0] sm:$0xff] 0.0
      %77 = vst [vmem:[#allocation2 + $0xe8] sm:$0xff] 0.0
      %78 = vst [vmem:[#allocation2 + $0xf0] sm:$0xff] 0.0
      %79 = vst [vmem:[#allocation2 + $0xf8] sm:$0xff] 0.0
    $region25: #{tpu_custom_call.1} parent=1 // pred_fallthru
      _
    %v80 = vld [vmem:[#allocation2] sm:$0xff]
    %v81 = vld [vmem:[#allocation2 + $0x8] sm:$0xff]
    %v82 = vld [vmem:[#allocation2 + $0x10] sm:$0xff]
    %v83 = vld [vmem:[#allocation2 + $0x18] sm:$0xff]
    %v84 = vld [vmem:[#allocation2 + $0x20] sm:$0xff]
    %v85 = vld [vmem:[#allocation2 + $0x28] sm:$0xff]
    %v86 = vld [vmem:[#allocation2 + $0x30] sm:$0xff]
    %v87 = vld [vmem:[#allocation2 + $0x38] sm:$0xff]
    %v88 = vld [vmem:[#allocation2 + $0x40] sm:$0xff]
    %v89 = vld [vmem:[#allocation2 + $0x48] sm:$0xff]
    %v90 = vld [vmem:[#allocation2 + $0x50] sm:$0xff]
    %v91 = vld [vmem:[#allocation2 + $0x58] sm:$0xff]
    %v92 = vld [vmem:[#allocation2 + $0x60] sm:$0xff]
    %v93 = vld [vmem:[#allocation2 + $0x68] sm:$0xff]
    %v94 = vld [vmem:[#allocation2 + $0x70] sm:$0xff]
    %v95 = vld [vmem:[#allocation2 + $0x78] sm:$0xff]
    %v96 = vld [vmem:[#allocation2 + $0x80] sm:$0xff]
    %v97 = vld [vmem:[#allocation2 + $0x88] sm:$0xff]
    %v98 = vld [vmem:[#allocation2 + $0x90] sm:$0xff]
    %v99 = vld [vmem:[#allocation2 + $0x98] sm:$0xff]
    %v100 = vld [vmem:[#allocation2 + $0xa0] sm:$0xff]
    %v101 = vld [vmem:[#allocation2 + $0xa8] sm:$0xff]
    %v102 = vld [vmem:[#allocation2 + $0xb0] sm:$0xff]
    %v103 = vld [vmem:[#allocation2 + $0xb8] sm:$0xff]
    %v104 = vld [vmem:[#allocation2 + $0xc0] sm:$0xff]
    %v105 = vld [vmem:[#allocation2 + $0xc8] sm:$0xff]
    %v106 = vld [vmem:[#allocation2 + $0xd0] sm:$0xff]
    %v107 = vld [vmem:[#allocation2 + $0xd8] sm:$0xff]
    %v108 = vld [vmem:[#allocation2 + $0xe0] sm:$0xff]
    %v109 = vld [vmem:[#allocation2 + $0xe8] sm:$0xff]
    %v110 = vld [vmem:[#allocation2 + $0xf0] sm:$0xff]
    %v111 = vld [vmem:[#allocation2 + $0xf8] sm:$0xff]
    %v112 = vld [vmem:[#allocation3] sm:$0xff]
    %v113 = vld [vmem:[#allocation3 + $0x8] sm:$0xff]
    %v114 = vld [vmem:[#allocation3 + $0x10] sm:$0xff]
    %v115 = vld [vmem:[#allocation3 + $0x18] sm:$0xff]
    %v116 = vld [vmem:[#allocation3 + $0x20] sm:$0xff]
    %v117 = vld [vmem:[#allocation3 + $0x28] sm:$0xff]
    %v118 = vld [vmem:[#allocation3 + $0x30] sm:$0xff]
    %v119 = vld [vmem:[#allocation3 + $0x38] sm:$0xff]
    %v120 = vld [vmem:[#allocation3 + $0x40] sm:$0xff]
    %v121 = vld [vmem:[#allocation3 + $0x48] sm:$0xff]
    %v122 = vld [vmem:[#allocation3 + $0x50] sm:$0xff]
    %v123 = vld [vmem:[#allocation3 + $0x58] sm:$0xff]
    %v124 = vld [vmem:[#allocation3 + $0x60] sm:$0xff]
    %v125 = vld [vmem:[#allocation3 + $0x68] sm:$0xff]
    %v126 = vld [vmem:[#allocation3 + $0x70] sm:$0xff]
    %v127 = vld [vmem:[#allocation3 + $0x78] sm:$0xff]
    %v128 = vpack.c.bf16 %v113, %v112
    %v129 = vpack.c.bf16 %v115, %v114
    %v130 = vpack.c.bf16 %v117, %v116
    %v131 = vpack.c.bf16 %v119, %v118
    %v132 = vpack.c.bf16 %v121, %v120
    %v133 = vpack.c.bf16 %v123, %v122
    %v134 = vpack.c.bf16 %v125, %v124
    %v135 = vpack.c.bf16 %v127, %v126
    %v136 = vld [vmem:[#allocation6] sm:$0xff]
    %v137 = vld [vmem:[#allocation6 + $0x8] sm:$0xff]
    %v138 = vld [vmem:[#allocation6 + $0x10] sm:$0xff]
    %v139 = vld [vmem:[#allocation6 + $0x18] sm:$0xff]
    %v140 = vld [vmem:[#allocation6 + $0x20] sm:$0xff]
    %v141 = vld [vmem:[#allocation6 + $0x28] sm:$0xff]
    %v142 = vld [vmem:[#allocation6 + $0x30] sm:$0xff]
    %v143 = vld [vmem:[#allocation6 + $0x38] sm:$0xff]
    %v144 = vld [vmem:[#allocation6 + $0x40] sm:$0xff]
    %v145 = vld [vmem:[#allocation6 + $0x48] sm:$0xff]
    %v146 = vld [vmem:[#allocation6 + $0x50] sm:$0xff]
    %v147 = vld [vmem:[#allocation6 + $0x58] sm:$0xff]
    %v148 = vld [vmem:[#allocation6 + $0x60] sm:$0xff]
    %v149 = vld [vmem:[#allocation6 + $0x68] sm:$0xff]
    %v150 = vld [vmem:[#allocation6 + $0x70] sm:$0xff]
    %v151 = vld [vmem:[#allocation6 + $0x78] sm:$0xff]
    %v152 = vld [vmem:[#allocation6 + $0x80] sm:$0xff]
    %v153 = vld [vmem:[#allocation6 + $0x88] sm:$0xff]
    %v154 = vld [vmem:[#allocation6 + $0x90] sm:$0xff]
    %v155 = vld [vmem:[#allocation6 + $0x98] sm:$0xff]
    %v156 = vld [vmem:[#allocation6 + $0xa0] sm:$0xff]
    %v157 = vld [vmem:[#allocation6 + $0xa8] sm:$0xff]
    %v158 = vld [vmem:[#allocation6 + $0xb0] sm:$0xff]
    %v159 = vld [vmem:[#allocation6 + $0xb8] sm:$0xff]
    %v160 = vld [vmem:[#allocation6 + $0xc0] sm:$0xff]
    %v161 = vld [vmem:[#allocation6 + $0xc8] sm:$0xff]
    %v162 = vld [vmem:[#allocation6 + $0xd0] sm:$0xff]
    %v163 = vld [vmem:[#allocation6 + $0xd8] sm:$0xff]
    %v164 = vld [vmem:[#allocation6 + $0xe0] sm:$0xff]
    %v165 = vld [vmem:[#allocation6 + $0xe8] sm:$0xff]
    %v166 = vld [vmem:[#allocation6 + $0xf0] sm:$0xff]
    %v167 = vld [vmem:[#allocation6 + $0xf8] sm:$0xff]
    %v168 = vpack.c.bf16 %v138, %v136
    %v169 = vpack.c.bf16 %v139, %v137
    %v170 = vpack.c.bf16 %v142, %v140
    %v171 = vpack.c.bf16 %v143, %v141
    %v172 = vpack.c.bf16 %v146, %v144
    %v173 = vpack.c.bf16 %v147, %v145
    %v174 = vpack.c.bf16 %v150, %v148
    %v175 = vpack.c.bf16 %v151, %v149
    %v176 = vpack.c.bf16 %v154, %v152
    %v177 = vpack.c.bf16 %v155, %v153
    %v178 = vpack.c.bf16 %v158, %v156
    %v179 = vpack.c.bf16 %v159, %v157
    %v180 = vpack.c.bf16 %v162, %v160
    %v181 = vpack.c.bf16 %v163, %v161
    %v182 = vpack.c.bf16 %v166, %v164
    %v183 = vpack.c.bf16 %v167, %v165
    %184 = vmatprep.subr.bf16.mxu0 %v183
    %185 = vmatpush1.bf16.msra.mxu0 %v182
    %186 = vmatprep.subr.bf16.mxu0 %v181
    %187 = vmatpush1.bf16.msra.mxu0 %v180
    %188 = vmatprep.subr.bf16.mxu0 %v179
    %189 = vmatpush1.bf16.msra.mxu0 %v178
    %190 = vmatprep.subr.bf16.mxu0 %v177
    %191 = vmatpush1.bf16.msra.mxu0 %v176
    %192 = vmatprep.subr.bf16.mxu0 %v175
    %193 = vmatpush1.bf16.msra.mxu0 %v174
    %194 = vmatprep.subr.bf16.mxu0 %v173
    %195 = vmatpush1.bf16.msra.mxu0 %v172
    %196 = vmatprep.subr.bf16.mxu0 %v171
    %197 = vmatpush1.bf16.msra.mxu0 %v170
    %198 = vmatprep.subr.bf16.mxu0 %v169
    %199 = vmatpush1.bf16.msra.mxu0 %v168
    %200 = vmatprep.subr.bf16.mxu0 0
    %201 = vmatpush2.bf16.msra.mxu0 0
    %202 = vmatprep.subr.bf16.mxu0 0
    %203 = vmatpush2.bf16.msra.mxu0 0
    %204 = vmatprep.subr.bf16.mxu0 0
    %205 = vmatpush2.bf16.msra.mxu0 0
    %206 = vmatprep.subr.bf16.mxu0 0
    %207 = vmatpush2.bf16.msra.mxu0 0
    %208 = vmatprep.subr.bf16.mxu0 0
    %209 = vmatpush2.bf16.msra.mxu0 0
    %210 = vmatprep.subr.bf16.mxu0 0
    %211 = vmatpush2.bf16.msra.mxu0 0
    %212 = vmatprep.subr.bf16.mxu0 0
    %213 = vmatpush2.bf16.msra.mxu0 0
    %214 = vmatprep.subr.bf16.mxu0 0
    %215 = vmatpush2.bf16.msra.mxu0 0
    %216 = vmatprep.mubr.bf16.mxu0 0
    %217 = vmatmul.mubr.bf16.gmra.mxu0 %v128
    %v218 = vpop.f32.mrf.mxu0
    %v219 = vadd.f32 0.0, %v218
    %v220 = vpop.f32.mrf.mxu0
    %v221 = vadd.f32 0.0, %v220
    %v222 = vpop.f32.mrf.mxu0
    %v223 = vadd.f32 0.0, %v222
    %v224 = vpop.f32.mrf.mxu0
    %v225 = vadd.f32 0.0, %v224
    %226 = vmatprep.mubr.bf16.mxu0 0
    %227 = vmatmul.mubr.bf16.gmra.mxu0 %v129
    %v228 = vpop.f32.mrf.mxu0
    %v229 = vadd.f32 0.0, %v228
    %v230 = vpop.f32.mrf.mxu0
    %v231 = vadd.f32 0.0, %v230
    %v232 = vpop.f32.mrf.mxu0
    %v233 = vadd.f32 0.0, %v232
    %v234 = vpop.f32.mrf.mxu0
    %v235 = vadd.f32 0.0, %v234
    %236 = vmatprep.mubr.bf16.mxu0 0
    %237 = vmatmul.mubr.bf16.gmra.mxu0 %v130
    %v238 = vpop.f32.mrf.mxu0
    %v239 = vadd.f32 0.0, %v238
    %v240 = vpop.f32.mrf.mxu0
    %v241 = vadd.f32 0.0, %v240
    %v242 = vpop.f32.mrf.mxu0
    %v243 = vadd.f32 0.0, %v242
    %v244 = vpop.f32.mrf.mxu0
    %v245 = vadd.f32 0.0, %v244
    %246 = vmatprep.mubr.bf16.mxu0 0
    %247 = vmatmul.mubr.bf16.gmra.mxu0 %v131
    %v248 = vpop.f32.mrf.mxu0
    %v249 = vadd.f32 0.0, %v248
    %v250 = vpop.f32.mrf.mxu0
    %v251 = vadd.f32 0.0, %v250
    %v252 = vpop.f32.mrf.mxu0
    %v253 = vadd.f32 0.0, %v252
    %v254 = vpop.f32.mrf.mxu0
    %v255 = vadd.f32 0.0, %v254
    %256 = vmatprep.mubr.bf16.mxu0 0
    %257 = vmatmul.mubr.bf16.gmra.mxu0 %v132
    %v258 = vpop.f32.mrf.mxu0
    %v259 = vadd.f32 0.0, %v258
    %v260 = vpop.f32.mrf.mxu0
    %v261 = vadd.f32 0.0, %v260
    %v262 = vpop.f32.mrf.mxu0
    %v263 = vadd.f32 0.0, %v262
    %v264 = vpop.f32.mrf.mxu0
    %v265 = vadd.f32 0.0, %v264
    %266 = vmatprep.mubr.bf16.mxu0 0
    %267 = vmatmul.mubr.bf16.gmra.mxu0 %v133
    %v268 = vpop.f32.mrf.mxu0
    %v269 = vadd.f32 0.0, %v268
    %v270 = vpop.f32.mrf.mxu0
    %v271 = vadd.f32 0.0, %v270
    %v272 = vpop.f32.mrf.mxu0
    %v273 = vadd.f32 0.0, %v272
    %v274 = vpop.f32.mrf.mxu0
    %v275 = vadd.f32 0.0, %v274
    %276 = vmatprep.mubr.bf16.mxu0 0
    %277 = vmatmul.mubr.bf16.gmra.mxu0 %v134
    %v278 = vpop.f32.mrf.mxu0
    %v279 = vadd.f32 0.0, %v278
    %v280 = vpop.f32.mrf.mxu0
    %v281 = vadd.f32 0.0, %v280
    %v282 = vpop.f32.mrf.mxu0
    %v283 = vadd.f32 0.0, %v282
    %v284 = vpop.f32.mrf.mxu0
    %v285 = vadd.f32 0.0, %v284
    %286 = vmatprep.mubr.bf16.mxu0 0
    %287 = vmatmul.mubr.bf16.gmra.mxu0 %v135
    %v288 = vpop.f32.mrf.mxu0
    %v289 = vadd.f32 0.0, %v288
    %v290 = vpop.f32.mrf.mxu0
    %v291 = vadd.f32 0.0, %v290
    %v292 = vpop.f32.mrf.mxu0
    %v293 = vadd.f32 0.0, %v292
    %v294 = vpop.f32.mrf.mxu0
    %v295 = vadd.f32 0.0, %v294
    %296 = vdwg.mxu0
    %v297 = vadd.f32 %v80, %v219
    %v298 = vadd.f32 %v81, %v221
    %v299 = vadd.f32 %v82, %v223
    %v300 = vadd.f32 %v83, %v225
    %v301 = vadd.f32 %v84, %v229
    %v302 = vadd.f32 %v85, %v231
    %v303 = vadd.f32 %v86, %v233
    %v304 = vadd.f32 %v87, %v235
    %v305 = vadd.f32 %v88, %v239
    %v306 = vadd.f32 %v89, %v241
    %v307 = vadd.f32 %v90, %v243
    %v308 = vadd.f32 %v91, %v245
    %v309 = vadd.f32 %v92, %v249
    %v310 = vadd.f32 %v93, %v251
    %v311 = vadd.f32 %v94, %v253
    %v312 = vadd.f32 %v95, %v255
    %v313 = vadd.f32 %v96, %v259
    %v314 = vadd.f32 %v97, %v261
    %v315 = vadd.f32 %v98, %v263
    %v316 = vadd.f32 %v99, %v265
    %v317 = vadd.f32 %v100, %v269
    %v318 = vadd.f32 %v101, %v271
    %v319 = vadd.f32 %v102, %v273
    %v320 = vadd.f32 %v103, %v275
    %v321 = vadd.f32 %v104, %v279
    %v322 = vadd.f32 %v105, %v281
    %v323 = vadd.f32 %v106, %v283
    %v324 = vadd.f32 %v107, %v285
    %v325 = vadd.f32 %v108, %v289
    %v326 = vadd.f32 %v109, %v291
    %v327 = vadd.f32 %v110, %v293
    %v328 = vadd.f32 %v111, %v295
    %329 = vst [vmem:[#allocation2] sm:$0xff] %v297
    %330 = vst [vmem:[#allocation2 + $0x8] sm:$0xff] %v298
    %331 = vst [vmem:[#allocation2 + $0x10] sm:$0xff] %v299
    %332 = vst [vmem:[#allocation2 + $0x18] sm:$0xff] %v300
    %333 = vst [vmem:[#allocation2 + $0x20] sm:$0xff] %v301
    %334 = vst [vmem:[#allocation2 + $0x28] sm:$0xff] %v302
    %335 = vst [vmem:[#allocation2 + $0x30] sm:$0xff] %v303
    %336 = vst [vmem:[#allocation2 + $0x38] sm:$0xff] %v304
    %337 = vst [vmem:[#allocation2 + $0x40] sm:$0xff] %v305
    %338 = vst [vmem:[#allocation2 + $0x48] sm:$0xff] %v306
    %339 = vst [vmem:[#allocation2 + $0x50] sm:$0xff] %v307
    %340 = vst [vmem:[#allocation2 + $0x58] sm:$0xff] %v308
    %341 = vst [vmem:[#allocation2 + $0x60] sm:$0xff] %v309
    %342 = vst [vmem:[#allocation2 + $0x68] sm:$0xff] %v310
    %343 = vst [vmem:[#allocation2 + $0x70] sm:$0xff] %v311
    %344 = vst [vmem:[#allocation2 + $0x78] sm:$0xff] %v312
    %345 = vst [vmem:[#allocation2 + $0x80] sm:$0xff] %v313
    %346 = vst [vmem:[#allocation2 + $0x88] sm:$0xff] %v314
    %347 = vst [vmem:[#allocation2 + $0x90] sm:$0xff] %v315
    %348 = vst [vmem:[#allocation2 + $0x98] sm:$0xff] %v316
    %349 = vst [vmem:[#allocation2 + $0xa0] sm:$0xff] %v317
    %350 = vst [vmem:[#allocation2 + $0xa8] sm:$0xff] %v318
    %351 = vst [vmem:[#allocation2 + $0xb0] sm:$0xff] %v319
    %352 = vst [vmem:[#allocation2 + $0xb8] sm:$0xff] %v320
    %353 = vst [vmem:[#allocation2 + $0xc0] sm:$0xff] %v321
    %354 = vst [vmem:[#allocation2 + $0xc8] sm:$0xff] %v322
    %355 = vst [vmem:[#allocation2 + $0xd0] sm:$0xff] %v323
    %356 = vst [vmem:[#allocation2 + $0xd8] sm:$0xff] %v324
    %357 = vst [vmem:[#allocation2 + $0xe0] sm:$0xff] %v325
    %358 = vst [vmem:[#allocation2 + $0xe8] sm:$0xff] %v326
    %359 = vst [vmem:[#allocation2 + $0xf0] sm:$0xff] %v327
    %360 = vst [vmem:[#allocation2 + $0xf8] sm:$0xff] %v328
    // Predicated region
    $region26: #{tpu_custom_call.1} parent=1 // pred_check
      %p361 = pneg %p44
    $region27: #{tpu_custom_call.1} parent=1 // pred_check_branch
      %363 = sbr.rel (%p361) target = $region29
    $region28: #{tpu_custom_call.1} parent=1 // pred_region
      %v364 = vld [vmem:[#allocation2] sm:$0xff]
      %v365 = vld [vmem:[#allocation2 + $0x8] sm:$0xff]
      %v366 = vld [vmem:[#allocation2 + $0x10] sm:$0xff]
      %v367 = vld [vmem:[#allocation2 + $0x18] sm:$0xff]
      %v368 = vld [vmem:[#allocation2 + $0x20] sm:$0xff]
      %v369 = vld [vmem:[#allocation2 + $0x28] sm:$0xff]
      %v370 = vld [vmem:[#allocation2 + $0x30] sm:$0xff]
      %v371 = vld [vmem:[#allocation2 + $0x38] sm:$0xff]
      %v372 = vld [vmem:[#allocation2 + $0x40] sm:$0xff]
      %v373 = vld [vmem:[#allocation2 + $0x48] sm:$0xff]
      %v374 = vld [vmem:[#allocation2 + $0x50] sm:$0xff]
      %v375 = vld [vmem:[#allocation2 + $0x58] sm:$0xff]
      %v376 = vld [vmem:[#allocation2 + $0x60] sm:$0xff]
      %v377 = vld [vmem:[#allocation2 + $0x68] sm:$0xff]
      %v378 = vld [vmem:[#allocation2 + $0x70] sm:$0xff]
      %v379 = vld [vmem:[#allocation2 + $0x78] sm:$0xff]
      %v380 = vld [vmem:[#allocation2 + $0x80] sm:$0xff]
      %v381 = vld [vmem:[#allocation2 + $0x88] sm:$0xff]
      %v382 = vld [vmem:[#allocation2 + $0x90] sm:$0xff]
      %v383 = vld [vmem:[#allocation2 + $0x98] sm:$0xff]
      %v384 = vld [vmem:[#allocation2 + $0xa0] sm:$0xff]
      %v385 = vld [vmem:[#allocation2 + $0xa8] sm:$0xff]
      %v386 = vld [vmem:[#allocation2 + $0xb0] sm:$0xff]
      %v387 = vld [vmem:[#allocation2 + $0xb8] sm:$0xff]
      %v388 = vld [vmem:[#allocation2 + $0xc0] sm:$0xff]
      %v389 = vld [vmem:[#allocation2 + $0xc8] sm:$0xff]
      %v390 = vld [vmem:[#allocation2 + $0xd0] sm:$0xff]
      %v391 = vld [vmem:[#allocation2 + $0xd8] sm:$0xff]
      %v392 = vld [vmem:[#allocation2 + $0xe0] sm:$0xff]
      %v393 = vld [vmem:[#allocation2 + $0xe8] sm:$0xff]
      %v394 = vld [vmem:[#allocation2 + $0xf0] sm:$0xff]
      %v395 = vld [vmem:[#allocation2 + $0xf8] sm:$0xff]
      %v396 = vld [vmem:[%s2] sm:$0x3]
      %v398 = vlaneseq
      %v399 = vshrl.u32 %v398, 7
      %v400 = vsub.s32 0, %v399
      %v401 = vrot.slane %v396, %v400
      %v402 = vlaneseq
      %v403 = vshrl.u32 %v402, 7
      %v404 = vsub.s32 1, %v403
      %v405 = vrot.slane %v396, %v404
      %v408 = vadd.f32 %v364, %v401
      %v409 = vadd.f32 %v365, %v405
      %v410 = vadd.f32 %v366, %v401
      %v411 = vadd.f32 %v367, %v405
      %v412 = vadd.f32 %v368, %v401
      %v413 = vadd.f32 %v369, %v405
      %v414 = vadd.f32 %v370, %v401
      %v415 = vadd.f32 %v371, %v405
      %v416 = vadd.f32 %v372, %v401
      %v417 = vadd.f32 %v373, %v405
      %v418 = vadd.f32 %v374, %v401
      %v419 = vadd.f32 %v375, %v405
      %v420 = vadd.f32 %v376, %v401
      %v421 = vadd.f32 %v377, %v405
      %v422 = vadd.f32 %v378, %v401
      %v423 = vadd.f32 %v379, %v405
      %v424 = vadd.f32 %v380, %v401
      %v425 = vadd.f32 %v381, %v405
      %v426 = vadd.f32 %v382, %v401
      %v427 = vadd.f32 %v383, %v405
      %v428 = vadd.f32 %v384, %v401
      %v429 = vadd.f32 %v385, %v405
      %v430 = vadd.f32 %v386, %v401
      %v431 = vadd.f32 %v387, %v405
      %v432 = vadd.f32 %v388, %v401
      %v433 = vadd.f32 %v389, %v405
      %v434 = vadd.f32 %v390, %v401
      %v435 = vadd.f32 %v391, %v405
      %v436 = vadd.f32 %v392, %v401
      %v437 = vadd.f32 %v393, %v405
      %v438 = vadd.f32 %v394, %v401
      %v439 = vadd.f32 %v395, %v405
      %440 = vst [vmem:[#allocation8] sm:$0xff] %v408
      %441 = vst [vmem:[#allocation8 + $0x8] sm:$0xff] %v409
      %442 = vst [vmem:[#allocation8 + $0x10] sm:$0xff] %v410
      %443 = vst [vmem:[#allocation8 + $0x18] sm:$0xff] %v411
      %444 = vst [vmem:[#allocation8 + $0x20] sm:$0xff] %v412
      %445 = vst [vmem:[#allocation8 + $0x28] sm:$0xff] %v413
      %446 = vst [vmem:[#allocation8 + $0x30] sm:$0xff] %v414
      %447 = vst [vmem:[#allocation8 + $0x38] sm:$0xff] %v415
      %448 = vst [vmem:[#allocation8 + $0x40] sm:$0xff] %v416
      %449 = vst [vmem:[#allocation8 + $0x48] sm:$0xff] %v417
      %450 = vst [vmem:[#allocation8 + $0x50] sm:$0xff] %v418
      %451 = vst [vmem:[#allocation8 + $0x58] sm:$0xff] %v419
      %452 = vst [vmem:[#allocation8 + $0x60] sm:$0xff] %v420
      %453 = vst [vmem:[#allocation8 + $0x68] sm:$0xff] %v421
      %454 = vst [vmem:[#allocation8 + $0x70] sm:$0xff] %v422
      %455 = vst [vmem:[#allocation8 + $0x78] sm:$0xff] %v423
      %456 = vst [vmem:[#allocation8 + $0x80] sm:$0xff] %v424
      %457 = vst [vmem:[#allocation8 + $0x88] sm:$0xff] %v425
      %458 = vst [vmem:[#allocation8 + $0x90] sm:$0xff] %v426
      %459 = vst [vmem:[#allocation8 + $0x98] sm:$0xff] %v427
      %460 = vst [vmem:[#allocation8 + $0xa0] sm:$0xff] %v428
      %461 = vst [vmem:[#allocation8 + $0xa8] sm:$0xff] %v429
      %462 = vst [vmem:[#allocation8 + $0xb0] sm:$0xff] %v430
      %463 = vst [vmem:[#allocation8 + $0xb8] sm:$0xff] %v431
      %464 = vst [vmem:[#allocation8 + $0xc0] sm:$0xff] %v432
      %465 = vst [vmem:[#allocation8 + $0xc8] sm:$0xff] %v433
      %466 = vst [vmem:[#allocation8 + $0xd0] sm:$0xff] %v434
      %467 = vst [vmem:[#allocation8 + $0xd8] sm:$0xff] %v435
      %468 = vst [vmem:[#allocation8 + $0xe0] sm:$0xff] %v436
      %469 = vst [vmem:[#allocation8 + $0xe8] sm:$0xff] %v437
      %470 = vst [vmem:[#allocation8 + $0xf0] sm:$0xff] %v438
      %471 = vst [vmem:[#allocation8 + $0xf8] sm:$0xff] %v439
    $region29: #{tpu_custom_call.1} parent=1 // pred_fallthru
      _
    // Predicated region
    $region30: #{tpu_custom_call.1} parent=1 // pred_check
      _
    $region31: #{tpu_custom_call.1} parent=1 // pred_check_branch
      %473 = sbr.rel (0) target = $region33
    $region32: #{tpu_custom_call.1} parent=1 // pred_region
      %s475 = ssub.s32 4096, 4096
      %476 = vsyncadd [#allocation5], %s475
      %s477 = sshll.u32 [#allocation8], 4
      %s478 = int_to_ptr.vmem [resolvable:$true] %s477
      %483 = dma.vmem_to_hbm [thread:$0]  %s478, 4096, %s3, [#allocation5], 256, 256, 16
    $region33: #{tpu_custom_call.1} parent=1 // pred_fallthru
      _
    // Predicated region
    $region34: #{tpu_custom_call.1} parent=1 // pred_check
      _
    $region35: #{tpu_custom_call.1} parent=1 // pred_check_branch
      %485 = sbr.rel (0) target = $region37
    $region36: #{tpu_custom_call.1} parent=1 // pred_region
      %486 = dma.done [#allocation5], 4096
    $region37: #{tpu_custom_call.1} parent=1 // pred_fallthru
      _
    %487 = vsyncpa [#allocation4], 1
    %488 = vsyncpa [#allocation7], 1
    %489 = vsyncpa [#allocation5], 1

</llo_original>
